<compile_context>
chip_gen: v7x
topology: tpu7x:2x2x1
jax: 0.10.0
libtpu: 0.0.40
codegen_flags: <defaults>
</compile_context>

<pallas_src>
import functools

import jax
import jax.numpy as jnp
from jax import lax
from jax.experimental import pallas as pl
from jax.experimental.pallas import tpu as pltpu


def _lstm_classifier_kernel(x_ref,      # ((T+1)*Bp, I)  bf16, time-major, last slot zeros
                            wih0s_ref,  # (I, 8H)        bf16, gate-interleaved, layer-1 cols 0
                            bbig_ref,   # (1, 8H)        f32, gate-interleaved [b0 | b1]
                            wbig_ref,   # (2H, 8H)       bf16, block recurrent weight
                            wfc_ref,    # (H, NPAD)      bf16, fc weight padded to 128 lanes
                            bfc_ref,    # (1, NPAD)      f32
                            out_ref,    # (Bp, NPAD)     f32, lane-dense
                            xp_s,       # VMEM ((T+1)*Bp, 8H) f32 scratch
                            *, T, Bp, H):
    H2 = 2 * H

    # ---- prepass (off the serial chain): layer-0 input projection for all T timesteps
    # plus one zero "drain" slot (which therefore holds just the biases), in ONE bf16
    # MXU matmul with f32 accumulation; biases folded in here.
    xp_s[...] = (jnp.dot(x_ref[...], wih0s_ref[...],
                         preferred_element_type=jnp.float32)
                 + bbig_ref[...])

    # hoisted loop-invariant weight load (small at H=32; see TODO for large H)
    wbig = wbig_ref[...]

    def packed_cell(gates, c):
        # gates (Bp, 8H) packed over both layers: [i0 i1 | f0 f1 | g0 g1 | o0 o1];
        # c (Bp, 2H) packed [c0 | c1].  One full-width sigmoid, tanh only on g.
        sg = jax.nn.sigmoid(gates)
        i = sg[:, 0 * H2:1 * H2]
        f = sg[:, 1 * H2:2 * H2]
        o = sg[:, 3 * H2:4 * H2]
        g = jnp.tanh(gates[:, 2 * H2:3 * H2])
        c_new = f * c + i * g
        h_new = o * jnp.tanh(c_new)
        return h_new, c_new

    # ---- warm-up (s=0): h==0 so gates are exactly xp[0]; layer-1 half is masked back
    # to the zero initial state (layer-1 must not update before it has seen h0_0).
    mask0 = (lax.broadcasted_iota(jnp.int32, (Bp, H2), 1) < H).astype(jnp.float32)
    h, c = packed_cell(xp_s[pl.ds(0, Bp), :], jnp.zeros((Bp, H2), jnp.float32))
    h = h * mask0
    c = c * mask0

    # ---- staggered recurrence: step s computes layer-0 @ t=s and layer-1 @ t=s-1 in a
    # single fused (Bp,2H)x(2H,8H) matmul.  s runs 1..T; at s=T (drain) only the
    # layer-1 half is meaningful, the layer-0 half is discarded.
    def step(s, carry):
        h, c = carry
        row = pl.multiple_of(s * Bp, 8)            # Bp is a multiple of 8 -> aligned
        gates = (jnp.dot(h.astype(jnp.bfloat16), wbig,
                         preferred_element_type=jnp.float32)
                 + xp_s[pl.ds(row, Bp), :])
        return packed_cell(gates, c)

    h, _ = lax.fori_loop(1, T + 1, step, (h, c), unroll=True)

    # ---- fc head on the last timestep's top-layer hidden state (lane half [H:2H]).
    h1 = h[:, H:H2]
    out_ref[...] = (jnp.dot(h1.astype(jnp.bfloat16), wfc_ref[...],
                            preferred_element_type=jnp.float32)
                    + bfc_ref[...])


def _interleave_gates(a, b, H):
    """Interleave two (r, 4H) gate-major blocks into (r, 8H): [iA iB | fA fB | gA gB | oA oB]."""
    r = a.shape[0]
    return jnp.stack([a.reshape(r, 4, H), b.reshape(r, 4, H)], axis=2).reshape(r, 8 * H)


def prepare_params(params, nclass_pad=128):
    """One-time weight transforms: block/interleave stacking, lane padding, bf16 casts."""
    H = params["whh0"].shape[0]
    I = params["wih0"].shape[0]
    nclass = params["wfc"].shape[1]

    # Block-diagonal staggered recurrent weight: rows 0..H-1 multiply h0_{s-1}
    # (-> Whh0 for layer-0 gates, Wih1 for layer-1 gates), rows H..2H-1 multiply
    # h1_{s-2} (-> 0 for layer-0 gates, Whh1 for layer-1 gates).
    zeros_h = jnp.zeros((H, 4 * H), jnp.float32)
    wbig = jnp.concatenate([
        _interleave_gates(params["whh0"], params["wih1"], H),
        _interleave_gates(zeros_h, params["whh1"], H),
    ], axis=0)                                              # (2H, 8H)

    # Layer-0 input projection scattered into the interleaved gate layout (layer-1
    # columns zero), and the combined interleaved bias [b0 | b1].
    wih0s = _interleave_gates(params["wih0"], jnp.zeros((I, 4 * H), jnp.float32), H)
    bbig = _interleave_gates(params["b0"], params["b1"], H)

    # Lane-dense fc head: pad to 128 output lanes, wrapper slices back to nclass.
    wfc = jnp.zeros((H, nclass_pad), jnp.float32).at[:, :nclass].set(params["wfc"])
    bfc = jnp.zeros((1, nclass_pad), jnp.float32).at[:, :nclass].set(params["bfc"])

    return {
        "wih0s": wih0s.astype(jnp.bfloat16),
        "bbig": bbig,                          # bias stays f32 (added after f32 accum)
        "wbig": wbig.astype(jnp.bfloat16),
        "wfc": wfc.astype(jnp.bfloat16),
        "bfc": bfc,
    }


@functools.partial(jax.jit, static_argnames=("nclass",))
def lstm_classifier_pallas(x, prepped, *, nclass):
    """x: (B, T, input_size) float32 (batch_first, like the PyTorch module)."""
    B, T, I = x.shape
    H = prepped["wbig"].shape[0] // 2
    npad = prepped["wfc"].shape[1]
    Bp = max(8, ((B + 7) // 8) * 8)            # sublane-aligned batch

    # time-major, batch padded to Bp rows, one extra zero "drain" time slot, flattened
    # so the layer-0 projection is a single MXU matmul inside the kernel.
    x_tm = jnp.transpose(x, (1, 0, 2))                       # (T, B, I)
    x_tm = jnp.pad(x_tm, ((0, 1), (0, Bp - B), (0, 0)))      # (T+1, Bp, I)
    x_tm = x_tm.reshape((T + 1) * Bp, I).astype(jnp.bfloat16)
    # TODO(synk): at real sequence lengths fold this transpose into a chunked prepass
    # DMA instead of materializing it (extra HBM pass).

    vmem = pl.BlockSpec(memory_space=pltpu.MemorySpace.VMEM)
    kernel = functools.partial(_lstm_classifier_kernel, T=T, Bp=Bp, H=H)
    out = pl.pallas_call(
        kernel,
        out_shape=jax.ShapeDtypeStruct((Bp, npad), jnp.float32),
        in_specs=[vmem] * 6,
        out_specs=vmem,
        scratch_shapes=[pltpu.VMEM(((T + 1) * Bp, 8 * H), jnp.float32)],
    )(x_tm, prepped["wih0s"], prepped["bbig"], prepped["wbig"],
      prepped["wfc"], prepped["bfc"])
    return out[:B, :nclass]


def init_params(key, input_size, hidden_size, nclass=2):
    """Deterministic init mimicking PyTorch's U(-1/sqrt(H), 1/sqrt(H)).

    Weights stored pre-transposed: W_ih^T (in_dim, 4H), W_hh^T (H, 4H),
    b = b_ih + b_hh folded into a single (1, 4H) bias per layer.  PyTorch gate
    ordering [i, f, g, o].
    """
    H = hidden_size
    k = 1.0 / jnp.sqrt(H)
    keys = jax.random.split(key, 10)

    def u(kk, shape):
        return jax.random.uniform(kk, shape, jnp.float32, minval=-k, maxval=k)

    params = {
        "wih0": u(keys[0], (input_size, 4 * H)),
        "whh0": u(keys[1], (H, 4 * H)),
        "b0":   u(keys[2], (1, 4 * H)) + u(keys[3], (1, 4 * H)),
        "wih1": u(keys[4], (H, 4 * H)),
        "whh1": u(keys[5], (H, 4 * H)),
        "b1":   u(keys[6], (1, 4 * H)) + u(keys[7], (1, 4 * H)),
        "wfc":  u(keys[8], (H, nclass)),
        "bfc":  u(keys[9], (1, nclass)),
    }
    return params


def lstm_classifier_ref(x, params):
    """Pure-JAX f32 reference (literal PyTorch math) for correctness check."""
    B, T, I = x.shape
    H = params["whh0"].shape[0]

    def cell(x_t, h, c, wih, whh, b):
        gates = x_t @ wih + h @ whh + b
        i = jax.nn.sigmoid(gates[:, 0 * H:1 * H])
        f = jax.nn.sigmoid(gates[:, 1 * H:2 * H])
        g = jnp.tanh(gates[:, 2 * H:3 * H])
        o = jax.nn.sigmoid(gates[:, 3 * H:4 * H])
        c_new = f * c + i * g
        return o * jnp.tanh(c_new), c_new

    h0 = c0 = h1 = c1 = jnp.zeros((B, H), jnp.float32)
    for t in range(T):
        h0, c0 = cell(x[:, t, :], h0, c0, params["wih0"], params["whh0"], params["b0"])
        h1, c1 = cell(h0, h1, c1, params["wih1"], params["whh1"], params["b1"])
    return h1 @ params["wfc"] + params["bfc"]


if __name__ == "__main__":
    B, T, INPUT, HIDDEN, NCLASS = 2, 8, 16, 32, 2

    key = jax.random.PRNGKey(0)
    kx, kp = jax.random.split(key)
    x = jax.random.normal(kx, (B, T, INPUT), jnp.float32)
    params = init_params(kp, INPUT, HIDDEN, NCLASS)
    prepped = prepare_params(params)           # one-time weight transforms

    out = lstm_classifier_pallas(x, prepped, nclass=NCLASS)
    out = jax.block_until_ready(out)

    ref = lstm_classifier_ref(x, params)
    assert out.shape == (B, NCLASS)
    # bf16 MXU operands + f32 accumulation: slightly widened tolerance vs the pure-f32
    # reference (rounding accumulates over the T-step recurrence).
    assert jnp.allclose(out, ref, atol=3e-2, rtol=3e-2), (out, ref)

    print("KERNEL_OK")
</pallas_src>

<mosaic_0001>
module attributes {stable_mosaic.version = 11 : i64} {
  func.func @_lstm_classifier_kernel(%arg0: memref<72x16xbf16, #tpu.memory_space<vmem>>, %arg1: memref<16x256xbf16, #tpu.memory_space<vmem>>, %arg2: memref<1x256xf32, #tpu.memory_space<vmem>>, %arg3: memref<64x256xbf16, #tpu.memory_space<vmem>>, %arg4: memref<32x128xbf16, #tpu.memory_space<vmem>>, %arg5: memref<1x128xf32, #tpu.memory_space<vmem>>, %arg6: memref<8x128xf32, #tpu.memory_space<vmem>>, %arg7: memref<72x256xf32, #tpu.memory_space<vmem>>) attributes {dimension_semantics = [], scalar_prefetch = 0 : i64, scratch_operands = 1 : i64, tpu.core_type = #tpu.core_type<tc>} {
    %c0 = arith.constant 0 : index
    %c0_0 = arith.constant 0 : index
    %0 = vector.load %arg0[%c0, %c0_0] : memref<72x16xbf16, #tpu.memory_space<vmem>>, vector<72x16xbf16>
    %c0_1 = arith.constant 0 : index
    %c0_2 = arith.constant 0 : index
    %1 = vector.load %arg1[%c0_1, %c0_2] : memref<16x256xbf16, #tpu.memory_space<vmem>>, vector<16x256xbf16>
    %cst = arith.constant dense<0.000000e+00> : vector<72x256xf32>
    %2 = tpu.matmul %0, %1, %cst {dimension_numbers = #tpu.dot_dimension_numbers<[1], [0], [0], [1], [0, 0, 1, 1], [], []>} : vector<72x16xbf16>, vector<16x256xbf16>, vector<72x256xf32> -> vector<72x256xf32>
    %c0_3 = arith.constant 0 : index
    %c0_4 = arith.constant 0 : index
    %3 = vector.load %arg2[%c0_3, %c0_4] : memref<1x256xf32, #tpu.memory_space<vmem>>, vector<1x256xf32>
    %4 = vector.broadcast %3 : vector<1x256xf32> to vector<72x256xf32>
    %5 = arith.addf %2, %4 : vector<72x256xf32>
    %c0_5 = arith.constant 0 : index
    %c0_6 = arith.constant 0 : index
    %6 = vector.load %arg7[%c0_5, %c0_6] : memref<72x256xf32, #tpu.memory_space<vmem>>, vector<72x256xf32>
    tpu.vector_store %arg7[%c0_5, %c0_6], %5 {strides = array<i32>} : memref<72x256xf32, #tpu.memory_space<vmem>>, vector<72x256xf32>,
    %c0_7 = arith.constant 0 : index
    %c0_8 = arith.constant 0 : index
    %7 = vector.load %arg3[%c0_7, %c0_8] : memref<64x256xbf16, #tpu.memory_space<vmem>>, vector<64x256xbf16>
    %8 = tpu.iota {dimensions = array<i32: 1>} : vector<8x64xi32>
    %c32_i32 = arith.constant 32 : i32
    %9 = vector.broadcast %c32_i32 : i32 to vector<8x64xi32>
    %10 = arith.cmpi slt, %8, %9 : vector<8x64xi32>
    %11 = arith.extui %10 : vector<8x64xi1> to vector<8x64xi32>
    %12 = arith.sitofp %11 : vector<8x64xi32> to vector<8x64xf32>
    %c0_9 = arith.constant 0 : index
    %c0_10 = arith.constant 0 : index
    %13 = vector.load %arg7[%c0_9, %c0_10] : memref<72x256xf32, #tpu.memory_space<vmem>>, vector<8x256xf32>
    %cst_11 = arith.constant 0.000000e+00 : f32
    %14 = vector.broadcast %cst_11 : f32 to vector<8x64xf32>
    %15 = arith.negf %13 : vector<8x256xf32>
    %16 = math.exp %15 : vector<8x256xf32>
    %cst_12 = arith.constant 1.000000e+00 : f32
    %17 = vector.broadcast %cst_12 : f32 to vector<8x256xf32>
    %18 = arith.addf %17, %16 : vector<8x256xf32>
    %19 = arith.divf %17, %18 : vector<8x256xf32>
    %20 = vector.extract_strided_slice %19 {offsets = [0, 0], sizes = [8, 64], strides = [1, 1]} : vector<8x256xf32> to vector<8x64xf32>
    %21 = vector.extract_strided_slice %19 {offsets = [0, 64], sizes = [8, 64], strides = [1, 1]} : vector<8x256xf32> to vector<8x64xf32>
    %22 = vector.extract_strided_slice %19 {offsets = [0, 192], sizes = [8, 64], strides = [1, 1]} : vector<8x256xf32> to vector<8x64xf32>
    %23 = vector.extract_strided_slice %13 {offsets = [0, 128], sizes = [8, 64], strides = [1, 1]} : vector<8x256xf32> to vector<8x64xf32>
    %24 = math.tanh %23 : vector<8x64xf32>
    %25 = arith.mulf %21, %14 : vector<8x64xf32>
    %26 = arith.mulf %20, %24 : vector<8x64xf32>
    %27 = arith.addf %25, %26 : vector<8x64xf32>
    %28 = math.tanh %27 : vector<8x64xf32>
    %29 = arith.mulf %22, %28 : vector<8x64xf32>
    %30 = arith.mulf %29, %12 : vector<8x64xf32>
    %31 = arith.mulf %27, %12 : vector<8x64xf32>
    %c1_i32 = arith.constant 1 : i32
    %c8_i32 = arith.constant 8 : i32
    %32 = arith.muli %c1_i32, %c8_i32 : i32
    %33 = tpu.assume_multiple %32, 8 : i32
    %34 = arith.truncf %30 : vector<8x64xf32> to vector<8x64xbf16>
    %cst_13 = arith.constant dense<0.000000e+00> : vector<8x256xf32>
    %35 = tpu.matmul %34, %7, %cst_13 {dimension_numbers = #tpu.dot_dimension_numbers<[1], [0], [0], [1], [0, 0, 1, 1], [], []>} : vector<8x64xbf16>, vector<64x256xbf16>, vector<8x256xf32> -> vector<8x256xf32>
    %36 = arith.index_cast %33 : i32 to index
    %c0_14 = arith.constant 0 : index
    %37 = vector.load %arg7[%36, %c0_14] : memref<72x256xf32, #tpu.memory_space<vmem>>, vector<8x256xf32>
    %38 = arith.addf %35, %37 : vector<8x256xf32>
    %39 = arith.negf %38 : vector<8x256xf32>
    %40 = math.exp %39 : vector<8x256xf32>
    %cst_15 = arith.constant 1.000000e+00 : f32
    %41 = vector.broadcast %cst_15 : f32 to vector<8x256xf32>
    %42 = arith.addf %41, %40 : vector<8x256xf32>
    %43 = arith.divf %41, %42 : vector<8x256xf32>
    %44 = vector.extract_strided_slice %43 {offsets = [0, 0], sizes = [8, 64], strides = [1, 1]} : vector<8x256xf32> to vector<8x64xf32>
    %45 = vector.extract_strided_slice %43 {offsets = [0, 64], sizes = [8, 64], strides = [1, 1]} : vector<8x256xf32> to vector<8x64xf32>
    %46 = vector.extract_strided_slice %43 {offsets = [0, 192], sizes = [8, 64], strides = [1, 1]} : vector<8x256xf32> to vector<8x64xf32>
    %47 = vector.extract_strided_slice %38 {offsets = [0, 128], sizes = [8, 64], strides = [1, 1]} : vector<8x256xf32> to vector<8x64xf32>
    %48 = math.tanh %47 : vector<8x64xf32>
    %49 = arith.mulf %45, %31 : vector<8x64xf32>
    %50 = arith.mulf %44, %48 : vector<8x64xf32>
    %51 = arith.addf %49, %50 : vector<8x64xf32>
    %52 = math.tanh %51 : vector<8x64xf32>
    %53 = arith.mulf %46, %52 : vector<8x64xf32>
    %c2_i32 = arith.constant 2 : i32
    %c8_i32_16 = arith.constant 8 : i32
    %54 = arith.muli %c2_i32, %c8_i32_16 : i32
    %55 = tpu.assume_multiple %54, 8 : i32
    %56 = arith.truncf %53 : vector<8x64xf32> to vector<8x64xbf16>
    %cst_17 = arith.constant dense<0.000000e+00> : vector<8x256xf32>
    %57 = tpu.matmul %56, %7, %cst_17 {dimension_numbers = #tpu.dot_dimension_numbers<[1], [0], [0], [1], [0, 0, 1, 1], [], []>} : vector<8x64xbf16>, vector<64x256xbf16>, vector<8x256xf32> -> vector<8x256xf32>
    %58 = arith.index_cast %55 : i32 to index
    %c0_18 = arith.constant 0 : index
    %59 = vector.load %arg7[%58, %c0_18] : memref<72x256xf32, #tpu.memory_space<vmem>>, vector<8x256xf32>
    %60 = arith.addf %57, %59 : vector<8x256xf32>
    %61 = arith.negf %60 : vector<8x256xf32>
    %62 = math.exp %61 : vector<8x256xf32>
    %cst_19 = arith.constant 1.000000e+00 : f32
    %63 = vector.broadcast %cst_19 : f32 to vector<8x256xf32>
    %64 = arith.addf %63, %62 : vector<8x256xf32>
    %65 = arith.divf %63, %64 : vector<8x256xf32>
    %66 = vector.extract_strided_slice %65 {offsets = [0, 0], sizes = [8, 64], strides = [1, 1]} : vector<8x256xf32> to vector<8x64xf32>
    %67 = vector.extract_strided_slice %65 {offsets = [0, 64], sizes = [8, 64], strides = [1, 1]} : vector<8x256xf32> to vector<8x64xf32>
    %68 = vector.extract_strided_slice %65 {offsets = [0, 192], sizes = [8, 64], strides = [1, 1]} : vector<8x256xf32> to vector<8x64xf32>
    %69 = vector.extract_strided_slice %60 {offsets = [0, 128], sizes = [8, 64], strides = [1, 1]} : vector<8x256xf32> to vector<8x64xf32>
    %70 = math.tanh %69 : vector<8x64xf32>
    %71 = arith.mulf %67, %51 : vector<8x64xf32>
    %72 = arith.mulf %66, %70 : vector<8x64xf32>
    %73 = arith.addf %71, %72 : vector<8x64xf32>
    %74 = math.tanh %73 : vector<8x64xf32>
    %75 = arith.mulf %68, %74 : vector<8x64xf32>
    %c3_i32 = arith.constant 3 : i32
    %c8_i32_20 = arith.constant 8 : i32
    %76 = arith.muli %c3_i32, %c8_i32_20 : i32
    %77 = tpu.assume_multiple %76, 8 : i32
    %78 = arith.truncf %75 : vector<8x64xf32> to vector<8x64xbf16>
    %cst_21 = arith.constant dense<0.000000e+00> : vector<8x256xf32>
    %79 = tpu.matmul %78, %7, %cst_21 {dimension_numbers = #tpu.dot_dimension_numbers<[1], [0], [0], [1], [0, 0, 1, 1], [], []>} : vector<8x64xbf16>, vector<64x256xbf16>, vector<8x256xf32> -> vector<8x256xf32>
    %80 = arith.index_cast %77 : i32 to index
    %c0_22 = arith.constant 0 : index
    %81 = vector.load %arg7[%80, %c0_22] : memref<72x256xf32, #tpu.memory_space<vmem>>, vector<8x256xf32>
    %82 = arith.addf %79, %81 : vector<8x256xf32>
    %83 = arith.negf %82 : vector<8x256xf32>
    %84 = math.exp %83 : vector<8x256xf32>
    %cst_23 = arith.constant 1.000000e+00 : f32
    %85 = vector.broadcast %cst_23 : f32 to vector<8x256xf32>
    %86 = arith.addf %85, %84 : vector<8x256xf32>
    %87 = arith.divf %85, %86 : vector<8x256xf32>
    %88 = vector.extract_strided_slice %87 {offsets = [0, 0], sizes = [8, 64], strides = [1, 1]} : vector<8x256xf32> to vector<8x64xf32>
    %89 = vector.extract_strided_slice %87 {offsets = [0, 64], sizes = [8, 64], strides = [1, 1]} : vector<8x256xf32> to vector<8x64xf32>
    %90 = vector.extract_strided_slice %87 {offsets = [0, 192], sizes = [8, 64], strides = [1, 1]} : vector<8x256xf32> to vector<8x64xf32>
    %91 = vector.extract_strided_slice %82 {offsets = [0, 128], sizes = [8, 64], strides = [1, 1]} : vector<8x256xf32> to vector<8x64xf32>
    %92 = math.tanh %91 : vector<8x64xf32>
    %93 = arith.mulf %89, %73 : vector<8x64xf32>
    %94 = arith.mulf %88, %92 : vector<8x64xf32>
    %95 = arith.addf %93, %94 : vector<8x64xf32>
    %96 = math.tanh %95 : vector<8x64xf32>
    %97 = arith.mulf %90, %96 : vector<8x64xf32>
    %c4_i32 = arith.constant 4 : i32
    %c8_i32_24 = arith.constant 8 : i32
    %98 = arith.muli %c4_i32, %c8_i32_24 : i32
    %99 = tpu.assume_multiple %98, 8 : i32
    %100 = arith.truncf %97 : vector<8x64xf32> to vector<8x64xbf16>
    %cst_25 = arith.constant dense<0.000000e+00> : vector<8x256xf32>
    %101 = tpu.matmul %100, %7, %cst_25 {dimension_numbers = #tpu.dot_dimension_numbers<[1], [0], [0], [1], [0, 0, 1, 1], [], []>} : vector<8x64xbf16>, vector<64x256xbf16>, vector<8x256xf32> -> vector<8x256xf32>
    %102 = arith.index_cast %99 : i32 to index
    %c0_26 = arith.constant 0 : index
    %103 = vector.load %arg7[%102, %c0_26] : memref<72x256xf32, #tpu.memory_space<vmem>>, vector<8x256xf32>
    %104 = arith.addf %101, %103 : vector<8x256xf32>
    %105 = arith.negf %104 : vector<8x256xf32>
    %106 = math.exp %105 : vector<8x256xf32>
    %cst_27 = arith.constant 1.000000e+00 : f32
    %107 = vector.broadcast %cst_27 : f32 to vector<8x256xf32>
    %108 = arith.addf %107, %106 : vector<8x256xf32>
    %109 = arith.divf %107, %108 : vector<8x256xf32>
    %110 = vector.extract_strided_slice %109 {offsets = [0, 0], sizes = [8, 64], strides = [1, 1]} : vector<8x256xf32> to vector<8x64xf32>
    %111 = vector.extract_strided_slice %109 {offsets = [0, 64], sizes = [8, 64], strides = [1, 1]} : vector<8x256xf32> to vector<8x64xf32>
    %112 = vector.extract_strided_slice %109 {offsets = [0, 192], sizes = [8, 64], strides = [1, 1]} : vector<8x256xf32> to vector<8x64xf32>
    %113 = vector.extract_strided_slice %104 {offsets = [0, 128], sizes = [8, 64], strides = [1, 1]} : vector<8x256xf32> to vector<8x64xf32>
    %114 = math.tanh %113 : vector<8x64xf32>
    %115 = arith.mulf %111, %95 : vector<8x64xf32>
    %116 = arith.mulf %110, %114 : vector<8x64xf32>
    %117 = arith.addf %115, %116 : vector<8x64xf32>
    %118 = math.tanh %117 : vector<8x64xf32>
    %119 = arith.mulf %112, %118 : vector<8x64xf32>
    %c5_i32 = arith.constant 5 : i32
    %c8_i32_28 = arith.constant 8 : i32
    %120 = arith.muli %c5_i32, %c8_i32_28 : i32
    %121 = tpu.assume_multiple %120, 8 : i32
    %122 = arith.truncf %119 : vector<8x64xf32> to vector<8x64xbf16>
    %cst_29 = arith.constant dense<0.000000e+00> : vector<8x256xf32>
    %123 = tpu.matmul %122, %7, %cst_29 {dimension_numbers = #tpu.dot_dimension_numbers<[1], [0], [0], [1], [0, 0, 1, 1], [], []>} : vector<8x64xbf16>, vector<64x256xbf16>, vector<8x256xf32> -> vector<8x256xf32>
    %124 = arith.index_cast %121 : i32 to index
    %c0_30 = arith.constant 0 : index
    %125 = vector.load %arg7[%124, %c0_30] : memref<72x256xf32, #tpu.memory_space<vmem>>, vector<8x256xf32>
    %126 = arith.addf %123, %125 : vector<8x256xf32>
    %127 = arith.negf %126 : vector<8x256xf32>
    %128 = math.exp %127 : vector<8x256xf32>
    %cst_31 = arith.constant 1.000000e+00 : f32
    %129 = vector.broadcast %cst_31 : f32 to vector<8x256xf32>
    %130 = arith.addf %129, %128 : vector<8x256xf32>
    %131 = arith.divf %129, %130 : vector<8x256xf32>
    %132 = vector.extract_strided_slice %131 {offsets = [0, 0], sizes = [8, 64], strides = [1, 1]} : vector<8x256xf32> to vector<8x64xf32>
    %133 = vector.extract_strided_slice %131 {offsets = [0, 64], sizes = [8, 64], strides = [1, 1]} : vector<8x256xf32> to vector<8x64xf32>
    %134 = vector.extract_strided_slice %131 {offsets = [0, 192], sizes = [8, 64], strides = [1, 1]} : vector<8x256xf32> to vector<8x64xf32>
    %135 = vector.extract_strided_slice %126 {offsets = [0, 128], sizes = [8, 64], strides = [1, 1]} : vector<8x256xf32> to vector<8x64xf32>
    %136 = math.tanh %135 : vector<8x64xf32>
    %137 = arith.mulf %133, %117 : vector<8x64xf32>
    %138 = arith.mulf %132, %136 : vector<8x64xf32>
    %139 = arith.addf %137, %138 : vector<8x64xf32>
    %140 = math.tanh %139 : vector<8x64xf32>
    %141 = arith.mulf %134, %140 : vector<8x64xf32>
    %c6_i32 = arith.constant 6 : i32
    %c8_i32_32 = arith.constant 8 : i32
    %142 = arith.muli %c6_i32, %c8_i32_32 : i32
    %143 = tpu.assume_multiple %142, 8 : i32
    %144 = arith.truncf %141 : vector<8x64xf32> to vector<8x64xbf16>
    %cst_33 = arith.constant dense<0.000000e+00> : vector<8x256xf32>
    %145 = tpu.matmul %144, %7, %cst_33 {dimension_numbers = #tpu.dot_dimension_numbers<[1], [0], [0], [1], [0, 0, 1, 1], [], []>} : vector<8x64xbf16>, vector<64x256xbf16>, vector<8x256xf32> -> vector<8x256xf32>
    %146 = arith.index_cast %143 : i32 to index
    %c0_34 = arith.constant 0 : index
    %147 = vector.load %arg7[%146, %c0_34] : memref<72x256xf32, #tpu.memory_space<vmem>>, vector<8x256xf32>
    %148 = arith.addf %145, %147 : vector<8x256xf32>
    %149 = arith.negf %148 : vector<8x256xf32>
    %150 = math.exp %149 : vector<8x256xf32>
    %cst_35 = arith.constant 1.000000e+00 : f32
    %151 = vector.broadcast %cst_35 : f32 to vector<8x256xf32>
    %152 = arith.addf %151, %150 : vector<8x256xf32>
    %153 = arith.divf %151, %152 : vector<8x256xf32>
    %154 = vector.extract_strided_slice %153 {offsets = [0, 0], sizes = [8, 64], strides = [1, 1]} : vector<8x256xf32> to vector<8x64xf32>
    %155 = vector.extract_strided_slice %153 {offsets = [0, 64], sizes = [8, 64], strides = [1, 1]} : vector<8x256xf32> to vector<8x64xf32>
    %156 = vector.extract_strided_slice %153 {offsets = [0, 192], sizes = [8, 64], strides = [1, 1]} : vector<8x256xf32> to vector<8x64xf32>
    %157 = vector.extract_strided_slice %148 {offsets = [0, 128], sizes = [8, 64], strides = [1, 1]} : vector<8x256xf32> to vector<8x64xf32>
    %158 = math.tanh %157 : vector<8x64xf32>
    %159 = arith.mulf %155, %139 : vector<8x64xf32>
    %160 = arith.mulf %154, %158 : vector<8x64xf32>
    %161 = arith.addf %159, %160 : vector<8x64xf32>
    %162 = math.tanh %161 : vector<8x64xf32>
    %163 = arith.mulf %156, %162 : vector<8x64xf32>
    %c7_i32 = arith.constant 7 : i32
    %c8_i32_36 = arith.constant 8 : i32
    %164 = arith.muli %c7_i32, %c8_i32_36 : i32
    %165 = tpu.assume_multiple %164, 8 : i32
    %166 = arith.truncf %163 : vector<8x64xf32> to vector<8x64xbf16>
    %cst_37 = arith.constant dense<0.000000e+00> : vector<8x256xf32>
    %167 = tpu.matmul %166, %7, %cst_37 {dimension_numbers = #tpu.dot_dimension_numbers<[1], [0], [0], [1], [0, 0, 1, 1], [], []>} : vector<8x64xbf16>, vector<64x256xbf16>, vector<8x256xf32> -> vector<8x256xf32>
    %168 = arith.index_cast %165 : i32 to index
    %c0_38 = arith.constant 0 : index
    %169 = vector.load %arg7[%168, %c0_38] : memref<72x256xf32, #tpu.memory_space<vmem>>, vector<8x256xf32>
    %170 = arith.addf %167, %169 : vector<8x256xf32>
    %171 = arith.negf %170 : vector<8x256xf32>
    %172 = math.exp %171 : vector<8x256xf32>
    %cst_39 = arith.constant 1.000000e+00 : f32
    %173 = vector.broadcast %cst_39 : f32 to vector<8x256xf32>
    %174 = arith.addf %173, %172 : vector<8x256xf32>
    %175 = arith.divf %173, %174 : vector<8x256xf32>
    %176 = vector.extract_strided_slice %175 {offsets = [0, 0], sizes = [8, 64], strides = [1, 1]} : vector<8x256xf32> to vector<8x64xf32>
    %177 = vector.extract_strided_slice %175 {offsets = [0, 64], sizes = [8, 64], strides = [1, 1]} : vector<8x256xf32> to vector<8x64xf32>
    %178 = vector.extract_strided_slice %175 {offsets = [0, 192], sizes = [8, 64], strides = [1, 1]} : vector<8x256xf32> to vector<8x64xf32>
    %179 = vector.extract_strided_slice %170 {offsets = [0, 128], sizes = [8, 64], strides = [1, 1]} : vector<8x256xf32> to vector<8x64xf32>
    %180 = math.tanh %179 : vector<8x64xf32>
    %181 = arith.mulf %177, %161 : vector<8x64xf32>
    %182 = arith.mulf %176, %180 : vector<8x64xf32>
    %183 = arith.addf %181, %182 : vector<8x64xf32>
    %184 = math.tanh %183 : vector<8x64xf32>
    %185 = arith.mulf %178, %184 : vector<8x64xf32>
    %c8_i32_40 = arith.constant 8 : i32
    %c8_i32_41 = arith.constant 8 : i32
    %186 = arith.muli %c8_i32_40, %c8_i32_41 : i32
    %187 = tpu.assume_multiple %186, 8 : i32
    %188 = arith.truncf %185 : vector<8x64xf32> to vector<8x64xbf16>
    %cst_42 = arith.constant dense<0.000000e+00> : vector<8x256xf32>
    %189 = tpu.matmul %188, %7, %cst_42 {dimension_numbers = #tpu.dot_dimension_numbers<[1], [0], [0], [1], [0, 0, 1, 1], [], []>} : vector<8x64xbf16>, vector<64x256xbf16>, vector<8x256xf32> -> vector<8x256xf32>
    %190 = arith.index_cast %187 : i32 to index
    %c0_43 = arith.constant 0 : index
    %191 = vector.load %arg7[%190, %c0_43] : memref<72x256xf32, #tpu.memory_space<vmem>>, vector<8x256xf32>
    %192 = arith.addf %189, %191 : vector<8x256xf32>
    %193 = arith.negf %192 : vector<8x256xf32>
    %194 = math.exp %193 : vector<8x256xf32>
    %cst_44 = arith.constant 1.000000e+00 : f32
    %195 = vector.broadcast %cst_44 : f32 to vector<8x256xf32>
    %196 = arith.addf %195, %194 : vector<8x256xf32>
    %197 = arith.divf %195, %196 : vector<8x256xf32>
    %198 = vector.extract_strided_slice %197 {offsets = [0, 0], sizes = [8, 64], strides = [1, 1]} : vector<8x256xf32> to vector<8x64xf32>
    %199 = vector.extract_strided_slice %197 {offsets = [0, 64], sizes = [8, 64], strides = [1, 1]} : vector<8x256xf32> to vector<8x64xf32>
    %200 = vector.extract_strided_slice %197 {offsets = [0, 192], sizes = [8, 64], strides = [1, 1]} : vector<8x256xf32> to vector<8x64xf32>
    %201 = vector.extract_strided_slice %192 {offsets = [0, 128], sizes = [8, 64], strides = [1, 1]} : vector<8x256xf32> to vector<8x64xf32>
    %202 = math.tanh %201 : vector<8x64xf32>
    %203 = arith.mulf %199, %183 : vector<8x64xf32>
    %204 = arith.mulf %198, %202 : vector<8x64xf32>
    %205 = arith.addf %203, %204 : vector<8x64xf32>
    %206 = math.tanh %205 : vector<8x64xf32>
    %207 = arith.mulf %200, %206 : vector<8x64xf32>
    %c8_i32_45 = arith.constant 8 : i32
    %208 = vector.extract_strided_slice %207 {offsets = [0, 32], sizes = [8, 32], strides = [1, 1]} : vector<8x64xf32> to vector<8x32xf32>
    %209 = arith.truncf %208 : vector<8x32xf32> to vector<8x32xbf16>
    %c0_46 = arith.constant 0 : index
    %c0_47 = arith.constant 0 : index
    %210 = vector.load %arg4[%c0_46, %c0_47] : memref<32x128xbf16, #tpu.memory_space<vmem>>, vector<32x128xbf16>
    %cst_48 = arith.constant dense<0.000000e+00> : vector<8x128xf32>
    %211 = tpu.matmul %209, %210, %cst_48 {dimension_numbers = #tpu.dot_dimension_numbers<[1], [0], [0], [1], [0, 0, 1, 1], [], []>} : vector<8x32xbf16>, vector<32x128xbf16>, vector<8x128xf32> -> vector<8x128xf32>
    %c0_49 = arith.constant 0 : index
    %c0_50 = arith.constant 0 : index
    %212 = vector.load %arg5[%c0_49, %c0_50] : memref<1x128xf32, #tpu.memory_space<vmem>>, vector<1x128xf32>
    %213 = vector.broadcast %212 : vector<1x128xf32> to vector<8x128xf32>
    %214 = arith.addf %211, %213 : vector<8x128xf32>
    %c0_51 = arith.constant 0 : index
    %c0_52 = arith.constant 0 : index
    %215 = vector.load %arg6[%c0_51, %c0_52] : memref<8x128xf32, #tpu.memory_space<vmem>>, vector<8x128xf32>
    tpu.vector_store %arg6[%c0_51, %c0_52], %214 {strides = array<i32>} : memref<8x128xf32, #tpu.memory_space<vmem>>, vector<8x128xf32>,
    return
  }
}

</mosaic_0001>

<llo_original>
// kernel: lstm_classifier_pallas.1
$region0: #{lstm_classifier_pallas.1}
  #allocation0 [shape = 'u32[]', space=smem, size = 0x4, offset = 0x4, fixed_abs, tag = 'smem constant byte address 0x4 - core index']
  #allocation1 [shape = 'u32[144,128]{1,0:T(1,128)}', space=vmem, size = 0x12000, scoped, tag = 'internal scratch']
  #allocation2 [shape = 'f32[72,256]{1,0:T(8,128)}', space=vmem, size = 0x12000, scoped, tag = 'scratch operand']
  %s0 = inlined_call_operand.vmem [shape: bf16[72,16], index: 0, kind: input, shape index: {}]
  %s1 = inlined_call_operand.vmem [shape: bf16[16,256], index: 1, kind: input, shape index: {}]
  %s2 = inlined_call_operand.vmem [shape: f32[1,256], index: 2, kind: input, shape index: {}]
  %s3 = inlined_call_operand.vmem [shape: bf16[64,256], index: 3, kind: input, shape index: {}]
  %s4 = inlined_call_operand.vmem [shape: bf16[32,128], index: 4, kind: input, shape index: {}]
  %s5 = inlined_call_operand.vmem [shape: f32[1,128], index: 5, kind: input, shape index: {}]
  %s6 = inlined_call_operand.vmem [shape: f32[8,128], index: 6, kind: output, shape index: {}]
  %s7 = sld [smem:[#allocation0]]
  $region34: #{lstm_classifier_pallas.1} parent=0
    _
  %s9 = ssub.s32 1, %s7
  %s10 = scalar_select 0, %s9, %s7
  // Predicated region
  $region2: #{lstm_classifier_pallas.1} parent=0 // pred_check
    _
  $region3: #{lstm_classifier_pallas.1} parent=0 // pred_check_branch
    %12 = sbr.rel (0) target = $region5
  $region4: #{lstm_classifier_pallas.1} parent=0 // pred_region
    _
  $region5: #{lstm_classifier_pallas.1} parent=0 // pred_fallthru
    _
  // Predicated region
  $region6: #{lstm_classifier_pallas.1} parent=0 // pred_check
    _
  $region7: #{lstm_classifier_pallas.1} parent=0 // pred_check_branch
    %14 = sbr.rel (0) target = $region9
  $region8: #{lstm_classifier_pallas.1} parent=0 // pred_region
    _
  $region9: #{lstm_classifier_pallas.1} parent=0 // pred_fallthru
    _
  // Predicated region
  $region10: #{lstm_classifier_pallas.1} parent=0 // pred_check
    _
  $region11: #{lstm_classifier_pallas.1} parent=0 // pred_check_branch
    %16 = sbr.rel (0) target = $region13
  $region12: #{lstm_classifier_pallas.1} parent=0 // pred_region
    _
  $region13: #{lstm_classifier_pallas.1} parent=0 // pred_fallthru
    _
  // Predicated region
  $region14: #{lstm_classifier_pallas.1} parent=0 // pred_check
    _
  $region15: #{lstm_classifier_pallas.1} parent=0 // pred_check_branch
    %18 = sbr.rel (0) target = $region17
  $region16: #{lstm_classifier_pallas.1} parent=0 // pred_region
    _
  $region17: #{lstm_classifier_pallas.1} parent=0 // pred_fallthru
    _
  // Predicated region
  $region18: #{lstm_classifier_pallas.1} parent=0 // pred_check
    _
  $region19: #{lstm_classifier_pallas.1} parent=0 // pred_check_branch
    %20 = sbr.rel (0) target = $region21
  $region20: #{lstm_classifier_pallas.1} parent=0 // pred_region
    _
  $region21: #{lstm_classifier_pallas.1} parent=0 // pred_fallthru
    _
  // Predicated region
  $region22: #{lstm_classifier_pallas.1} parent=0 // pred_check
    _
  $region23: #{lstm_classifier_pallas.1} parent=0 // pred_check_branch
    %22 = sbr.rel (0) target = $region25
  $region24: #{lstm_classifier_pallas.1} parent=0 // pred_region
    _
  $region25: #{lstm_classifier_pallas.1} parent=0 // pred_fallthru
    _
  %v24 = vld [vmem:[%s0] sm:$0xf]
  %v25 = vld [vmem:[%s0 + $0x4] sm:$0xf]
  %v26 = vld [vmem:[%s0 + $0x8] sm:$0xf]
  %v27 = vld [vmem:[%s0 + $0xc] sm:$0xf]
  %v28 = vld [vmem:[%s0 + $0x10] sm:$0xf]
  %v29 = vld [vmem:[%s0 + $0x14] sm:$0xf]
  %v30 = vld [vmem:[%s0 + $0x18] sm:$0xf]
  %v31 = vld [vmem:[%s0 + $0x1c] sm:$0xf]
  %v32 = vld [vmem:[%s0 + $0x20] sm:$0xf]
  %v33 = vld [vmem:[%s1] sm:$0xff]
  %v34 = vld [vmem:[%s1 + $0x8] sm:$0xff]
  %v35 = vld [vmem:[%s2] sm:$0x3]
  %v37 = vlaneseq
  %v38 = vshrl.u32 %v37, 7
  %v39 = vsub.s32 0, %v38
  %v40 = vrot.slane %v35, %v39
  %v41 = vlaneseq
  %v42 = vshrl.u32 %v41, 7
  %v43 = vsub.s32 1, %v42
  %v44 = vrot.slane %v35, %v43
  %v56 = vunpack.c.l.b16 %v24
  %v57 = vunpack.c.l.b16 %v25
  %v58 = vunpack.c.l.b16 %v26
  %v59 = vunpack.c.l.b16 %v27
  %v60 = vunpack.c.l.b16 %v28
  %v61 = vunpack.c.l.b16 %v29
  %v62 = vunpack.c.l.b16 %v30
  %v63 = vunpack.c.l.b16 %v31
  %v64 = vunpack.c.l.b16 %v32
  %v65 = vpack.c.b16 %v57, %v56
  %v66 = vpack.c.b16 %v59, %v58
  %v67 = vpack.c.b16 %v61, %v60
  %v68 = vpack.c.b16 %v63, %v62
  %v69 = vpack.c.b16 %v64, %v64
  %v72 = vunpack.c.l.b16 %v33
  %v73 = vunpack.c.h.b16 %v33
  %v74 = vunpack.c.l.b16 %v34
  %v75 = vunpack.c.h.b16 %v34
  %v76 = vpack.c.b16 %v74, %v72
  %v77 = vpack.c.b16 %v75, %v73
  %vm80 = vcmask 130048
  %v82 = vsel %vm80, %v65, 0
  %v85 = vsel %vm80, %v66, 0
  %v88 = vsel %vm80, %v67, 0
  %v91 = vsel %vm80, %v68, 0
  %v94 = vsel %vm80, %v69, 0
  %96 = vmatprep.subr.bf16.mxu0 %v77
  %97 = vmatpush1.bf16.msra.mxu0 %v76
  %98 = vmatprep.subr.bf16.mxu0 0
  %99 = vmatpush1.bf16.msra.mxu0 0
  %100 = vmatprep.subr.bf16.mxu0 0
  %101 = vmatpush1.bf16.msra.mxu0 0
  %102 = vmatprep.subr.bf16.mxu0 0
  %103 = vmatpush1.bf16.msra.mxu0 0
  %104 = vmatprep.subr.bf16.mxu0 0
  %105 = vmatpush1.bf16.msra.mxu0 0
  %106 = vmatprep.subr.bf16.mxu0 0
  %107 = vmatpush1.bf16.msra.mxu0 0
  %108 = vmatprep.subr.bf16.mxu0 0
  %109 = vmatpush1.bf16.msra.mxu0 0
  %110 = vmatprep.subr.bf16.mxu0 0
  %111 = vmatpush1.bf16.msra.mxu0 0
  %112 = vmatprep.subr.bf16.mxu0 0
  %113 = vmatpush1.bf16.msra.mxu0 0
  %114 = vmatprep.subr.bf16.mxu0 0
  %115 = vmatpush1.bf16.msra.mxu0 0
  %116 = vmatprep.subr.bf16.mxu0 0
  %117 = vmatpush1.bf16.msra.mxu0 0
  %118 = vmatprep.subr.bf16.mxu0 0
  %119 = vmatpush1.bf16.msra.mxu0 0
  %120 = vmatprep.subr.bf16.mxu0 0
  %121 = vmatpush1.bf16.msra.mxu0 0
  %122 = vmatprep.subr.bf16.mxu0 0
  %123 = vmatpush1.bf16.msra.mxu0 0
  %124 = vmatprep.subr.bf16.mxu0 0
  %125 = vmatpush1.bf16.msra.mxu0 0
  %126 = vmatprep.subr.bf16.mxu0 0
  %127 = vmatpush1.bf16.msra.mxu0 0
  %128 = vmatprep.mubr.bf16.mxu0 0
  %129 = vmatmul.mubr.bf16.gmra.mrb[0].mxu0 %v82
  %v130 = vpop.f32.mrb[0].mxu0
  %v131 = vadd.f32 %v40, %v130
  %v132 = vpop.f32.mrb[0].mxu0
  %v133 = vadd.f32 %v44, %v132
  %v134 = vpop.f32.mrb[0].mxu0
  %v135 = vadd.f32 %v40, %v134
  %v136 = vpop.f32.mrb[0].mxu0
  %v137 = vadd.f32 %v44, %v136
  %138 = vmatprep.mubr.bf16.mxu0 0
  %139 = vmatmul.mubr.bf16.gmra.mrb[0].mxu0 %v85
  %v140 = vpop.f32.mrb[0].mxu0
  %v141 = vadd.f32 %v40, %v140
  %v142 = vpop.f32.mrb[0].mxu0
  %v143 = vadd.f32 %v44, %v142
  %v144 = vpop.f32.mrb[0].mxu0
  %v145 = vadd.f32 %v40, %v144
  %v146 = vpop.f32.mrb[0].mxu0
  %v147 = vadd.f32 %v44, %v146
  %148 = vmatprep.mubr.bf16.mxu0 0
  %149 = vmatmul.mubr.bf16.gmra.mrb[0].mxu0 %v88
  %v150 = vpop.f32.mrb[0].mxu0
  %v151 = vadd.f32 %v40, %v150
  %v152 = vpop.f32.mrb[0].mxu0
  %v153 = vadd.f32 %v44, %v152
  %v154 = vpop.f32.mrb[0].mxu0
  %v155 = vadd.f32 %v40, %v154
  %v156 = vpop.f32.mrb[0].mxu0
  %v157 = vadd.f32 %v44, %v156
  %158 = vmatprep.mubr.bf16.mxu0 0
  %159 = vmatmul.mubr.bf16.gmra.mrb[0].mxu0 %v91
  %v160 = vpop.f32.mrb[0].mxu0
  %v161 = vadd.f32 %v40, %v160
  %v162 = vpop.f32.mrb[0].mxu0
  %v163 = vadd.f32 %v44, %v162
  %v164 = vpop.f32.mrb[0].mxu0
  %v165 = vadd.f32 %v40, %v164
  %v166 = vpop.f32.mrb[0].mxu0
  %v167 = vadd.f32 %v44, %v166
  %168 = vmatprep.mubr.bf16.mxu0 0
  %169 = vmatmul.mubr.bf16.gmra.mrb[0].mxu0 %v94
  %v170 = vpop.f32.mrb[0].mxu0
  %v171 = vadd.f32 %v40, %v170
  %v172 = vpop.f32.mrb[0].mxu0
  %v173 = vadd.f32 %v44, %v172
  %v174 = vpop.f32.mrb[0].mxu0
  %v175 = vpop.f32.mrb[0].mxu0
  %176 = vdwg.mxu0
  %177 = vst [vmem:[#allocation2] sm:$0xff] %v131
  %178 = vst [vmem:[#allocation2 + $0x8] sm:$0xff] %v133
  %179 = vst [vmem:[#allocation2 + $0x10] sm:$0xff] %v135
  %180 = vst [vmem:[#allocation2 + $0x18] sm:$0xff] %v137
  %181 = vst [vmem:[#allocation2 + $0x20] sm:$0xff] %v141
  %182 = vst [vmem:[#allocation2 + $0x28] sm:$0xff] %v143
  %183 = vst [vmem:[#allocation2 + $0x30] sm:$0xff] %v145
  %184 = vst [vmem:[#allocation2 + $0x38] sm:$0xff] %v147
  %185 = vst [vmem:[#allocation2 + $0x40] sm:$0xff] %v151
  %186 = vst [vmem:[#allocation2 + $0x48] sm:$0xff] %v153
  %187 = vst [vmem:[#allocation2 + $0x50] sm:$0xff] %v155
  %188 = vst [vmem:[#allocation2 + $0x58] sm:$0xff] %v157
  %189 = vst [vmem:[#allocation2 + $0x60] sm:$0xff] %v161
  %190 = vst [vmem:[#allocation2 + $0x68] sm:$0xff] %v163
  %191 = vst [vmem:[#allocation2 + $0x70] sm:$0xff] %v165
  %192 = vst [vmem:[#allocation2 + $0x78] sm:$0xff] %v167
  %193 = vst [vmem:[#allocation2 + $0x80] sm:$0xff] %v171
  %194 = vst [vmem:[#allocation2 + $0x88] sm:$0xff] %v173
  %v195 = vld [vmem:[%s3] sm:$0xff]
  %v196 = vld [vmem:[%s3 + $0x8] sm:$0xff]
  %v197 = vld [vmem:[%s3 + $0x10] sm:$0xff]
  %v198 = vld [vmem:[%s3 + $0x18] sm:$0xff]
  %v199 = vld [vmem:[%s3 + $0x20] sm:$0xff]
  %v200 = vld [vmem:[%s3 + $0x28] sm:$0xff]
  %v201 = vld [vmem:[%s3 + $0x30] sm:$0xff]
  %v202 = vld [vmem:[%s3 + $0x38] sm:$0xff]
  %v203 = vlaneseq
  %v204 = vand.u32 %v203, 127
  %vm205 = vcmp.lt.s32.totalorder %v204, 32
  %v206 = vsel %vm205, 1, 0
  %v207 = vcvt.s32.f32 %v206
  %v208 = vld [vmem:[#allocation2] sm:$0xff]
  %v209 = vld [vmem:[#allocation2 + $0x8] sm:$0xff]
  %v210 = vxor.u32 %v208, 2147483648
  %v211 = vxor.u32 %v209, 2147483648
  %v212 = vmul.f32 %v210, 1.442695
  %v213 = vpow.pop %v212
  %v214 = vmul.f32 %v211, 1.442695
  %v215 = vpow.pop %v214
  %v216 = vadd.f32 %v213, 1.0
  %v217 = vadd.f32 %v215, 1.0
  %v218 = vrcp.pop %v216
  %v219 = vmul.f32 1.0, %v218
  %v220 = vrcp.pop %v217
  %v221 = vmul.f32 1.0, %v220
  %v222 = vtanh.pop %v209
  %v223 = vmul.f32 %v219, 0.0
  %v224 = vmul.f32 %v219, %v222
  %226 = vrot.lane.b32.xlu0 %v224, 64
  %v227 = vpop.permute.xlu0 %226
  %v229 = vadd.f32 %v223, %v227
  %v230 = vtanh.pop %v229
  %v231 = vmul.f32 %v221, %v230
  %233 = vrot.lane.b32.xlu0 %v207, 64
  %v234 = vpop.permute.xlu0 %233
  %v236 = vmul.f32 %v231, %v234
  %v237 = vmul.f32 %v229, %v234
  %v238 = vpack.c.bf16 %v236, %v236
  %s239 = smul.u32 1, 2
  %s240 = smul.addr %s239, 8
  %s241 = scalar_lea.vmem [#allocation2], %s240
  %v242 = vld [vmem:[%s241] sm:$0xff]
  %v243 = vld [vmem:[%s241 + $0x8] sm:$0xff]
  %245 = vrot.lane.b32.xlu0 %v238, 64
  %v246 = vpop.permute.xlu0 %245
  %v255 = vunpack.c.l.b16 %v195
  %v256 = vunpack.c.h.b16 %v195
  %v257 = vunpack.c.l.b16 %v196
  %v258 = vunpack.c.h.b16 %v196
  %v259 = vunpack.c.l.b16 %v197
  %v260 = vunpack.c.h.b16 %v197
  %v261 = vunpack.c.l.b16 %v198
  %v262 = vunpack.c.h.b16 %v198
  %v263 = vunpack.c.l.b16 %v199
  %v264 = vunpack.c.h.b16 %v199
  %v265 = vunpack.c.l.b16 %v200
  %v266 = vunpack.c.h.b16 %v200
  %v267 = vunpack.c.l.b16 %v201
  %v268 = vunpack.c.h.b16 %v201
  %v269 = vunpack.c.l.b16 %v202
  %v270 = vunpack.c.h.b16 %v202
  %v271 = vpack.c.b16 %v257, %v255
  %v272 = vpack.c.b16 %v258, %v256
  %v273 = vpack.c.b16 %v261, %v259
  %v274 = vpack.c.b16 %v262, %v260
  %v275 = vpack.c.b16 %v265, %v263
  %v276 = vpack.c.b16 %v266, %v264
  %v277 = vpack.c.b16 %v269, %v267
  %v278 = vpack.c.b16 %v270, %v268
  %vm287 = vcmask 523264
  %v289 = vsel %vm287, %v246, 0
  %291 = vmatprep.subr.bf16.mxu0 %v272
  %292 = vmatpush1.bf16.msra.mxu0 %v271
  %293 = vmatprep.subr.bf16.mxu0 %v274
  %294 = vmatpush1.bf16.msra.mxu0 %v273
  %295 = vmatprep.subr.bf16.mxu0 %v276
  %296 = vmatpush1.bf16.msra.mxu0 %v275
  %297 = vmatprep.subr.bf16.mxu0 %v278
  %298 = vmatpush1.bf16.msra.mxu0 %v277
  %299 = vmatprep.subr.bf16.mxu0 0
  %300 = vmatpush1.bf16.msra.mxu0 0
  %301 = vmatprep.subr.bf16.mxu0 0
  %302 = vmatpush1.bf16.msra.mxu0 0
  %303 = vmatprep.subr.bf16.mxu0 0
  %304 = vmatpush1.bf16.msra.mxu0 0
  %305 = vmatprep.subr.bf16.mxu0 0
  %306 = vmatpush1.bf16.msra.mxu0 0
  %307 = vmatprep.subr.bf16.mxu0 0
  %308 = vmatpush1.bf16.msra.mxu0 0
  %309 = vmatprep.subr.bf16.mxu0 0
  %310 = vmatpush1.bf16.msra.mxu0 0
  %311 = vmatprep.subr.bf16.mxu0 0
  %312 = vmatpush1.bf16.msra.mxu0 0
  %313 = vmatprep.subr.bf16.mxu0 0
  %314 = vmatpush1.bf16.msra.mxu0 0
  %315 = vmatprep.subr.bf16.mxu0 0
  %316 = vmatpush1.bf16.msra.mxu0 0
  %317 = vmatprep.subr.bf16.mxu0 0
  %318 = vmatpush1.bf16.msra.mxu0 0
  %319 = vmatprep.subr.bf16.mxu0 0
  %320 = vmatpush1.bf16.msra.mxu0 0
  %321 = vmatprep.subr.bf16.mxu0 0
  %322 = vmatpush1.bf16.msra.mxu0 0
  %323 = vmatprep.mubr.bf16.mxu0 0
  %324 = vmatmul.mubr.bf16.gmra.mrb[0].mxu0 %v289
  %v325 = vpop.f32.mrb[0].mxu0
  %v326 = vadd.f32 %v242, %v325
  %v327 = vpop.f32.mrb[0].mxu0
  %v328 = vadd.f32 %v243, %v327
  %v329 = vpop.f32.mrb[0].mxu0
  %v330 = vpop.f32.mrb[0].mxu0
  %331 = vdwg.mxu0
  %v332 = vxor.u32 %v326, 2147483648
  %v333 = vxor.u32 %v328, 2147483648
  %v334 = vmul.f32 %v332, 1.442695
  %v335 = vpow.pop %v334
  %v336 = vmul.f32 %v333, 1.442695
  %v337 = vpow.pop %v336
  %v338 = vadd.f32 %v335, 1.0
  %v339 = vadd.f32 %v337, 1.0
  %v340 = vrcp.pop %v338
  %v341 = vmul.f32 1.0, %v340
  %v342 = vrcp.pop %v339
  %v343 = vmul.f32 1.0, %v342
  %v344 = vtanh.pop %v328
  %v345 = vmul.f32 %v341, %v237
  %v346 = vmul.f32 %v341, %v344
  %348 = vrot.lane.b32.xlu0 %v346, 64
  %v349 = vpop.permute.xlu0 %348
  %v351 = vadd.f32 %v345, %v349
  %v352 = vtanh.pop %v351
  %v353 = vmul.f32 %v343, %v352
  %v354 = vpack.c.bf16 %v353, %v353
  %s355 = smul.u32 2, 2
  %s356 = smul.addr %s355, 8
  %s357 = scalar_lea.vmem [#allocation2], %s356
  %v358 = vld [vmem:[%s357] sm:$0xff]
  %v359 = vld [vmem:[%s357 + $0x8] sm:$0xff]
  %361 = vrot.lane.b32.xlu0 %v354, 64
  %v362 = vpop.permute.xlu0 %361
  %v364 = vsel %vm287, %v362, 0
  %366 = vmatprep.subr.bf16.mxu0 %v272
  %367 = vmatpush1.bf16.msra.mxu0 %v271
  %368 = vmatprep.subr.bf16.mxu0 %v274
  %369 = vmatpush1.bf16.msra.mxu0 %v273
  %370 = vmatprep.subr.bf16.mxu0 %v276
  %371 = vmatpush1.bf16.msra.mxu0 %v275
  %372 = vmatprep.subr.bf16.mxu0 %v278
  %373 = vmatpush1.bf16.msra.mxu0 %v277
  %374 = vmatprep.subr.bf16.mxu0 0
  %375 = vmatpush1.bf16.msra.mxu0 0
  %376 = vmatprep.subr.bf16.mxu0 0
  %377 = vmatpush1.bf16.msra.mxu0 0
  %378 = vmatprep.subr.bf16.mxu0 0
  %379 = vmatpush1.bf16.msra.mxu0 0
  %380 = vmatprep.subr.bf16.mxu0 0
  %381 = vmatpush1.bf16.msra.mxu0 0
  %382 = vmatprep.subr.bf16.mxu0 0
  %383 = vmatpush1.bf16.msra.mxu0 0
  %384 = vmatprep.subr.bf16.mxu0 0
  %385 = vmatpush1.bf16.msra.mxu0 0
  %386 = vmatprep.subr.bf16.mxu0 0
  %387 = vmatpush1.bf16.msra.mxu0 0
  %388 = vmatprep.subr.bf16.mxu0 0
  %389 = vmatpush1.bf16.msra.mxu0 0
  %390 = vmatprep.subr.bf16.mxu0 0
  %391 = vmatpush1.bf16.msra.mxu0 0
  %392 = vmatprep.subr.bf16.mxu0 0
  %393 = vmatpush1.bf16.msra.mxu0 0
  %394 = vmatprep.subr.bf16.mxu0 0
  %395 = vmatpush1.bf16.msra.mxu0 0
  %396 = vmatprep.subr.bf16.mxu0 0
  %397 = vmatpush1.bf16.msra.mxu0 0
  %398 = vmatprep.mubr.bf16.mxu0 0
  %399 = vmatmul.mubr.bf16.gmra.mrb[0].mxu0 %v364
  %v400 = vpop.f32.mrb[0].mxu0
  %v401 = vadd.f32 %v358, %v400
  %v402 = vpop.f32.mrb[0].mxu0
  %v403 = vadd.f32 %v359, %v402
  %v404 = vpop.f32.mrb[0].mxu0
  %v405 = vpop.f32.mrb[0].mxu0
  %406 = vdwg.mxu0
  %v407 = vxor.u32 %v401, 2147483648
  %v408 = vxor.u32 %v403, 2147483648
  %v409 = vmul.f32 %v407, 1.442695
  %v410 = vpow.pop %v409
  %v411 = vmul.f32 %v408, 1.442695
  %v412 = vpow.pop %v411
  %v413 = vadd.f32 %v410, 1.0
  %v414 = vadd.f32 %v412, 1.0
  %v415 = vrcp.pop %v413
  %v416 = vmul.f32 1.0, %v415
  %v417 = vrcp.pop %v414
  %v418 = vmul.f32 1.0, %v417
  %v419 = vtanh.pop %v403
  %v420 = vmul.f32 %v416, %v351
  %v421 = vmul.f32 %v416, %v419
  %423 = vrot.lane.b32.xlu0 %v421, 64
  %v424 = vpop.permute.xlu0 %423
  %v426 = vadd.f32 %v420, %v424
  %v427 = vtanh.pop %v426
  %v428 = vmul.f32 %v418, %v427
  %v429 = vpack.c.bf16 %v428, %v428
  %s430 = smul.u32 3, 2
  %s431 = smul.addr %s430, 8
  %s432 = scalar_lea.vmem [#allocation2], %s431
  %v433 = vld [vmem:[%s432] sm:$0xff]
  %v434 = vld [vmem:[%s432 + $0x8] sm:$0xff]
  %436 = vrot.lane.b32.xlu0 %v429, 64
  %v437 = vpop.permute.xlu0 %436
  %v439 = vsel %vm287, %v437, 0
  %441 = vmatprep.subr.bf16.mxu0 %v272
  %442 = vmatpush1.bf16.msra.mxu0 %v271
  %443 = vmatprep.subr.bf16.mxu0 %v274
  %444 = vmatpush1.bf16.msra.mxu0 %v273
  %445 = vmatprep.subr.bf16.mxu0 %v276
  %446 = vmatpush1.bf16.msra.mxu0 %v275
  %447 = vmatprep.subr.bf16.mxu0 %v278
  %448 = vmatpush1.bf16.msra.mxu0 %v277
  %449 = vmatprep.subr.bf16.mxu0 0
  %450 = vmatpush1.bf16.msra.mxu0 0
  %451 = vmatprep.subr.bf16.mxu0 0
  %452 = vmatpush1.bf16.msra.mxu0 0
  %453 = vmatprep.subr.bf16.mxu0 0
  %454 = vmatpush1.bf16.msra.mxu0 0
  %455 = vmatprep.subr.bf16.mxu0 0
  %456 = vmatpush1.bf16.msra.mxu0 0
  %457 = vmatprep.subr.bf16.mxu0 0
  %458 = vmatpush1.bf16.msra.mxu0 0
  %459 = vmatprep.subr.bf16.mxu0 0
  %460 = vmatpush1.bf16.msra.mxu0 0
  %461 = vmatprep.subr.bf16.mxu0 0
  %462 = vmatpush1.bf16.msra.mxu0 0
  %463 = vmatprep.subr.bf16.mxu0 0
  %464 = vmatpush1.bf16.msra.mxu0 0
  %465 = vmatprep.subr.bf16.mxu0 0
  %466 = vmatpush1.bf16.msra.mxu0 0
  %467 = vmatprep.subr.bf16.mxu0 0
  %468 = vmatpush1.bf16.msra.mxu0 0
  %469 = vmatprep.subr.bf16.mxu0 0
  %470 = vmatpush1.bf16.msra.mxu0 0
  %471 = vmatprep.subr.bf16.mxu0 0
  %472 = vmatpush1.bf16.msra.mxu0 0
  %473 = vmatprep.mubr.bf16.mxu0 0
  %474 = vmatmul.mubr.bf16.gmra.mrb[0].mxu0 %v439
  %v475 = vpop.f32.mrb[0].mxu0
  %v476 = vadd.f32 %v433, %v475
  %v477 = vpop.f32.mrb[0].mxu0
  %v478 = vadd.f32 %v434, %v477
  %v479 = vpop.f32.mrb[0].mxu0
  %v480 = vpop.f32.mrb[0].mxu0
  %481 = vdwg.mxu0
  %v482 = vxor.u32 %v476, 2147483648
  %v483 = vxor.u32 %v478, 2147483648
  %v484 = vmul.f32 %v482, 1.442695
  %v485 = vpow.pop %v484
  %v486 = vmul.f32 %v483, 1.442695
  %v487 = vpow.pop %v486
  %v488 = vadd.f32 %v485, 1.0
  %v489 = vadd.f32 %v487, 1.0
  %v490 = vrcp.pop %v488
  %v491 = vmul.f32 1.0, %v490
  %v492 = vrcp.pop %v489
  %v493 = vmul.f32 1.0, %v492
  %v494 = vtanh.pop %v478
  %v495 = vmul.f32 %v491, %v426
  %v496 = vmul.f32 %v491, %v494
  %498 = vrot.lane.b32.xlu0 %v496, 64
  %v499 = vpop.permute.xlu0 %498
  %v501 = vadd.f32 %v495, %v499
  %v502 = vtanh.pop %v501
  %v503 = vmul.f32 %v493, %v502
  %v504 = vpack.c.bf16 %v503, %v503
  %s505 = smul.u32 4, 2
  %s506 = smul.addr %s505, 8
  %s507 = scalar_lea.vmem [#allocation2], %s506
  %v508 = vld [vmem:[%s507] sm:$0xff]
  %v509 = vld [vmem:[%s507 + $0x8] sm:$0xff]
  %511 = vrot.lane.b32.xlu0 %v504, 64
  %v512 = vpop.permute.xlu0 %511
  %v514 = vsel %vm287, %v512, 0
  %516 = vmatprep.subr.bf16.mxu0 %v272
  %517 = vmatpush1.bf16.msra.mxu0 %v271
  %518 = vmatprep.subr.bf16.mxu0 %v274
  %519 = vmatpush1.bf16.msra.mxu0 %v273
  %520 = vmatprep.subr.bf16.mxu0 %v276
  %521 = vmatpush1.bf16.msra.mxu0 %v275
  %522 = vmatprep.subr.bf16.mxu0 %v278
  %523 = vmatpush1.bf16.msra.mxu0 %v277
  %524 = vmatprep.subr.bf16.mxu0 0
  %525 = vmatpush1.bf16.msra.mxu0 0
  %526 = vmatprep.subr.bf16.mxu0 0
  %527 = vmatpush1.bf16.msra.mxu0 0
  %528 = vmatprep.subr.bf16.mxu0 0
  %529 = vmatpush1.bf16.msra.mxu0 0
  %530 = vmatprep.subr.bf16.mxu0 0
  %531 = vmatpush1.bf16.msra.mxu0 0
  %532 = vmatprep.subr.bf16.mxu0 0
  %533 = vmatpush1.bf16.msra.mxu0 0
  %534 = vmatprep.subr.bf16.mxu0 0
  %535 = vmatpush1.bf16.msra.mxu0 0
  %536 = vmatprep.subr.bf16.mxu0 0
  %537 = vmatpush1.bf16.msra.mxu0 0
  %538 = vmatprep.subr.bf16.mxu0 0
  %539 = vmatpush1.bf16.msra.mxu0 0
  %540 = vmatprep.subr.bf16.mxu0 0
  %541 = vmatpush1.bf16.msra.mxu0 0
  %542 = vmatprep.subr.bf16.mxu0 0
  %543 = vmatpush1.bf16.msra.mxu0 0
  %544 = vmatprep.subr.bf16.mxu0 0
  %545 = vmatpush1.bf16.msra.mxu0 0
  %546 = vmatprep.subr.bf16.mxu0 0
  %547 = vmatpush1.bf16.msra.mxu0 0
  %548 = vmatprep.mubr.bf16.mxu0 0
  %549 = vmatmul.mubr.bf16.gmra.mrb[0].mxu0 %v514
  %v550 = vpop.f32.mrb[0].mxu0
  %v551 = vadd.f32 %v508, %v550
  %v552 = vpop.f32.mrb[0].mxu0
  %v553 = vadd.f32 %v509, %v552
  %v554 = vpop.f32.mrb[0].mxu0
  %v555 = vpop.f32.mrb[0].mxu0
  %556 = vdwg.mxu0
  %v557 = vxor.u32 %v551, 2147483648
  %v558 = vxor.u32 %v553, 2147483648
  %v559 = vmul.f32 %v557, 1.442695
  %v560 = vpow.pop %v559
  %v561 = vmul.f32 %v558, 1.442695
  %v562 = vpow.pop %v561
  %v563 = vadd.f32 %v560, 1.0
  %v564 = vadd.f32 %v562, 1.0
  %v565 = vrcp.pop %v563
  %v566 = vmul.f32 1.0, %v565
  %v567 = vrcp.pop %v564
  %v568 = vmul.f32 1.0, %v567
  %v569 = vtanh.pop %v553
  %v570 = vmul.f32 %v566, %v501
  %v571 = vmul.f32 %v566, %v569
  %573 = vrot.lane.b32.xlu0 %v571, 64
  %v574 = vpop.permute.xlu0 %573
  %v576 = vadd.f32 %v570, %v574
  %v577 = vtanh.pop %v576
  %v578 = vmul.f32 %v568, %v577
  %v579 = vpack.c.bf16 %v578, %v578
  %s580 = smul.u32 5, 2
  %s581 = smul.addr %s580, 8
  %s582 = scalar_lea.vmem [#allocation2], %s581
  %v583 = vld [vmem:[%s582] sm:$0xff]
  %v584 = vld [vmem:[%s582 + $0x8] sm:$0xff]
  %586 = vrot.lane.b32.xlu0 %v579, 64
  %v587 = vpop.permute.xlu0 %586
  %v589 = vsel %vm287, %v587, 0
  %591 = vmatprep.subr.bf16.mxu0 %v272
  %592 = vmatpush1.bf16.msra.mxu0 %v271
  %593 = vmatprep.subr.bf16.mxu0 %v274
  %594 = vmatpush1.bf16.msra.mxu0 %v273
  %595 = vmatprep.subr.bf16.mxu0 %v276
  %596 = vmatpush1.bf16.msra.mxu0 %v275
  %597 = vmatprep.subr.bf16.mxu0 %v278
  %598 = vmatpush1.bf16.msra.mxu0 %v277
  %599 = vmatprep.subr.bf16.mxu0 0
  %600 = vmatpush1.bf16.msra.mxu0 0
  %601 = vmatprep.subr.bf16.mxu0 0
  %602 = vmatpush1.bf16.msra.mxu0 0
  %603 = vmatprep.subr.bf16.mxu0 0
  %604 = vmatpush1.bf16.msra.mxu0 0
  %605 = vmatprep.subr.bf16.mxu0 0
  %606 = vmatpush1.bf16.msra.mxu0 0
  %607 = vmatprep.subr.bf16.mxu0 0
  %608 = vmatpush1.bf16.msra.mxu0 0
  %609 = vmatprep.subr.bf16.mxu0 0
  %610 = vmatpush1.bf16.msra.mxu0 0
  %611 = vmatprep.subr.bf16.mxu0 0
  %612 = vmatpush1.bf16.msra.mxu0 0
  %613 = vmatprep.subr.bf16.mxu0 0
  %614 = vmatpush1.bf16.msra.mxu0 0
  %615 = vmatprep.subr.bf16.mxu0 0
  %616 = vmatpush1.bf16.msra.mxu0 0
  %617 = vmatprep.subr.bf16.mxu0 0
  %618 = vmatpush1.bf16.msra.mxu0 0
  %619 = vmatprep.subr.bf16.mxu0 0
  %620 = vmatpush1.bf16.msra.mxu0 0
  %621 = vmatprep.subr.bf16.mxu0 0
  %622 = vmatpush1.bf16.msra.mxu0 0
  %623 = vmatprep.mubr.bf16.mxu0 0
  %624 = vmatmul.mubr.bf16.gmra.mrb[0].mxu0 %v589
  %v625 = vpop.f32.mrb[0].mxu0
  %v626 = vadd.f32 %v583, %v625
  %v627 = vpop.f32.mrb[0].mxu0
  %v628 = vadd.f32 %v584, %v627
  %v629 = vpop.f32.mrb[0].mxu0
  %v630 = vpop.f32.mrb[0].mxu0
  %631 = vdwg.mxu0
  %v632 = vxor.u32 %v626, 2147483648
  %v633 = vxor.u32 %v628, 2147483648
  %v634 = vmul.f32 %v632, 1.442695
  %v635 = vpow.pop %v634
  %v636 = vmul.f32 %v633, 1.442695
  %v637 = vpow.pop %v636
  %v638 = vadd.f32 %v635, 1.0
  %v639 = vadd.f32 %v637, 1.0
  %v640 = vrcp.pop %v638
  %v641 = vmul.f32 1.0, %v640
  %v642 = vrcp.pop %v639
  %v643 = vmul.f32 1.0, %v642
  %v644 = vtanh.pop %v628
  %v645 = vmul.f32 %v641, %v576
  %v646 = vmul.f32 %v641, %v644
  %648 = vrot.lane.b32.xlu0 %v646, 64
  %v649 = vpop.permute.xlu0 %648
  %v651 = vadd.f32 %v645, %v649
  %v652 = vtanh.pop %v651
  %v653 = vmul.f32 %v643, %v652
  %v654 = vpack.c.bf16 %v653, %v653
  %s655 = smul.u32 6, 2
  %s656 = smul.addr %s655, 8
  %s657 = scalar_lea.vmem [#allocation2], %s656
  %v658 = vld [vmem:[%s657] sm:$0xff]
  %v659 = vld [vmem:[%s657 + $0x8] sm:$0xff]
  %661 = vrot.lane.b32.xlu0 %v654, 64
  %v662 = vpop.permute.xlu0 %661
  %v664 = vsel %vm287, %v662, 0
  %666 = vmatprep.subr.bf16.mxu0 %v272
  %667 = vmatpush1.bf16.msra.mxu0 %v271
  %668 = vmatprep.subr.bf16.mxu0 %v274
  %669 = vmatpush1.bf16.msra.mxu0 %v273
  %670 = vmatprep.subr.bf16.mxu0 %v276
  %671 = vmatpush1.bf16.msra.mxu0 %v275
  %672 = vmatprep.subr.bf16.mxu0 %v278
  %673 = vmatpush1.bf16.msra.mxu0 %v277
  %674 = vmatprep.subr.bf16.mxu0 0
  %675 = vmatpush1.bf16.msra.mxu0 0
  %676 = vmatprep.subr.bf16.mxu0 0
  %677 = vmatpush1.bf16.msra.mxu0 0
  %678 = vmatprep.subr.bf16.mxu0 0
  %679 = vmatpush1.bf16.msra.mxu0 0
  %680 = vmatprep.subr.bf16.mxu0 0
  %681 = vmatpush1.bf16.msra.mxu0 0
  %682 = vmatprep.subr.bf16.mxu0 0
  %683 = vmatpush1.bf16.msra.mxu0 0
  %684 = vmatprep.subr.bf16.mxu0 0
  %685 = vmatpush1.bf16.msra.mxu0 0
  %686 = vmatprep.subr.bf16.mxu0 0
  %687 = vmatpush1.bf16.msra.mxu0 0
  %688 = vmatprep.subr.bf16.mxu0 0
  %689 = vmatpush1.bf16.msra.mxu0 0
  %690 = vmatprep.subr.bf16.mxu0 0
  %691 = vmatpush1.bf16.msra.mxu0 0
  %692 = vmatprep.subr.bf16.mxu0 0
  %693 = vmatpush1.bf16.msra.mxu0 0
  %694 = vmatprep.subr.bf16.mxu0 0
  %695 = vmatpush1.bf16.msra.mxu0 0
  %696 = vmatprep.subr.bf16.mxu0 0
  %697 = vmatpush1.bf16.msra.mxu0 0
  %698 = vmatprep.mubr.bf16.mxu0 0
  %699 = vmatmul.mubr.bf16.gmra.mrb[0].mxu0 %v664
  %v700 = vpop.f32.mrb[0].mxu0
  %v701 = vadd.f32 %v658, %v700
  %v702 = vpop.f32.mrb[0].mxu0
  %v703 = vadd.f32 %v659, %v702
  %v704 = vpop.f32.mrb[0].mxu0
  %v705 = vpop.f32.mrb[0].mxu0
  %706 = vdwg.mxu0
  %v707 = vxor.u32 %v701, 2147483648
  %v708 = vxor.u32 %v703, 2147483648
  %v709 = vmul.f32 %v707, 1.442695
  %v710 = vpow.pop %v709
  %v711 = vmul.f32 %v708, 1.442695
  %v712 = vpow.pop %v711
  %v713 = vadd.f32 %v710, 1.0
  %v714 = vadd.f32 %v712, 1.0
  %v715 = vrcp.pop %v713
  %v716 = vmul.f32 1.0, %v715
  %v717 = vrcp.pop %v714
  %v718 = vmul.f32 1.0, %v717
  %v719 = vtanh.pop %v703
  %v720 = vmul.f32 %v716, %v651
  %v721 = vmul.f32 %v716, %v719
  %723 = vrot.lane.b32.xlu0 %v721, 64
  %v724 = vpop.permute.xlu0 %723
  %v726 = vadd.f32 %v720, %v724
  %v727 = vtanh.pop %v726
  %v728 = vmul.f32 %v718, %v727
  %v729 = vpack.c.bf16 %v728, %v728
  %s730 = smul.u32 7, 2
  %s731 = smul.addr %s730, 8
  %s732 = scalar_lea.vmem [#allocation2], %s731
  %v733 = vld [vmem:[%s732] sm:$0xff]
  %v734 = vld [vmem:[%s732 + $0x8] sm:$0xff]
  %736 = vrot.lane.b32.xlu0 %v729, 64
  %v737 = vpop.permute.xlu0 %736
  %v739 = vsel %vm287, %v737, 0
  %741 = vmatprep.subr.bf16.mxu0 %v272
  %742 = vmatpush1.bf16.msra.mxu0 %v271
  %743 = vmatprep.subr.bf16.mxu0 %v274
  %744 = vmatpush1.bf16.msra.mxu0 %v273
  %745 = vmatprep.subr.bf16.mxu0 %v276
  %746 = vmatpush1.bf16.msra.mxu0 %v275
  %747 = vmatprep.subr.bf16.mxu0 %v278
  %748 = vmatpush1.bf16.msra.mxu0 %v277
  %749 = vmatprep.subr.bf16.mxu0 0
  %750 = vmatpush1.bf16.msra.mxu0 0
  %751 = vmatprep.subr.bf16.mxu0 0
  %752 = vmatpush1.bf16.msra.mxu0 0
  %753 = vmatprep.subr.bf16.mxu0 0
  %754 = vmatpush1.bf16.msra.mxu0 0
  %755 = vmatprep.subr.bf16.mxu0 0
  %756 = vmatpush1.bf16.msra.mxu0 0
  %757 = vmatprep.subr.bf16.mxu0 0
  %758 = vmatpush1.bf16.msra.mxu0 0
  %759 = vmatprep.subr.bf16.mxu0 0
  %760 = vmatpush1.bf16.msra.mxu0 0
  %761 = vmatprep.subr.bf16.mxu0 0
  %762 = vmatpush1.bf16.msra.mxu0 0
  %763 = vmatprep.subr.bf16.mxu0 0
  %764 = vmatpush1.bf16.msra.mxu0 0
  %765 = vmatprep.subr.bf16.mxu0 0
  %766 = vmatpush1.bf16.msra.mxu0 0
  %767 = vmatprep.subr.bf16.mxu0 0
  %768 = vmatpush1.bf16.msra.mxu0 0
  %769 = vmatprep.subr.bf16.mxu0 0
  %770 = vmatpush1.bf16.msra.mxu0 0
  %771 = vmatprep.subr.bf16.mxu0 0
  %772 = vmatpush1.bf16.msra.mxu0 0
  %773 = vmatprep.mubr.bf16.mxu0 0
  %774 = vmatmul.mubr.bf16.gmra.mrb[0].mxu0 %v739
  %v775 = vpop.f32.mrb[0].mxu0
  %v776 = vadd.f32 %v733, %v775
  %v777 = vpop.f32.mrb[0].mxu0
  %v778 = vadd.f32 %v734, %v777
  %v779 = vpop.f32.mrb[0].mxu0
  %v780 = vpop.f32.mrb[0].mxu0
  %781 = vdwg.mxu0
  %v782 = vxor.u32 %v776, 2147483648
  %v783 = vxor.u32 %v778, 2147483648
  %v784 = vmul.f32 %v782, 1.442695
  %v785 = vpow.pop %v784
  %v786 = vmul.f32 %v783, 1.442695
  %v787 = vpow.pop %v786
  %v788 = vadd.f32 %v785, 1.0
  %v789 = vadd.f32 %v787, 1.0
  %v790 = vrcp.pop %v788
  %v791 = vmul.f32 1.0, %v790
  %v792 = vrcp.pop %v789
  %v793 = vmul.f32 1.0, %v792
  %v794 = vtanh.pop %v778
  %v795 = vmul.f32 %v791, %v726
  %v796 = vmul.f32 %v791, %v794
  %798 = vrot.lane.b32.xlu0 %v796, 64
  %v799 = vpop.permute.xlu0 %798
  %v801 = vadd.f32 %v795, %v799
  %v802 = vtanh.pop %v801
  %v803 = vmul.f32 %v793, %v802
  %v804 = vpack.c.bf16 %v803, %v803
  %s805 = smul.u32 8, 2
  %s806 = smul.addr %s805, 8
  %s807 = scalar_lea.vmem [#allocation2], %s806
  %v808 = vld [vmem:[%s807] sm:$0xff]
  %v809 = vld [vmem:[%s807 + $0x8] sm:$0xff]
  %811 = vrot.lane.b32.xlu0 %v804, 64
  %v812 = vpop.permute.xlu0 %811
  %v814 = vsel %vm287, %v812, 0
  %816 = vmatprep.subr.bf16.mxu0 %v272
  %817 = vmatpush1.bf16.msra.mxu0 %v271
  %818 = vmatprep.subr.bf16.mxu0 %v274
  %819 = vmatpush1.bf16.msra.mxu0 %v273
  %820 = vmatprep.subr.bf16.mxu0 %v276
  %821 = vmatpush1.bf16.msra.mxu0 %v275
  %822 = vmatprep.subr.bf16.mxu0 %v278
  %823 = vmatpush1.bf16.msra.mxu0 %v277
  %824 = vmatprep.subr.bf16.mxu0 0
  %825 = vmatpush1.bf16.msra.mxu0 0
  %826 = vmatprep.subr.bf16.mxu0 0
  %827 = vmatpush1.bf16.msra.mxu0 0
  %828 = vmatprep.subr.bf16.mxu0 0
  %829 = vmatpush1.bf16.msra.mxu0 0
  %830 = vmatprep.subr.bf16.mxu0 0
  %831 = vmatpush1.bf16.msra.mxu0 0
  %832 = vmatprep.subr.bf16.mxu0 0
  %833 = vmatpush1.bf16.msra.mxu0 0
  %834 = vmatprep.subr.bf16.mxu0 0
  %835 = vmatpush1.bf16.msra.mxu0 0
  %836 = vmatprep.subr.bf16.mxu0 0
  %837 = vmatpush1.bf16.msra.mxu0 0
  %838 = vmatprep.subr.bf16.mxu0 0
  %839 = vmatpush1.bf16.msra.mxu0 0
  %840 = vmatprep.subr.bf16.mxu0 0
  %841 = vmatpush1.bf16.msra.mxu0 0
  %842 = vmatprep.subr.bf16.mxu0 0
  %843 = vmatpush1.bf16.msra.mxu0 0
  %844 = vmatprep.subr.bf16.mxu0 0
  %845 = vmatpush1.bf16.msra.mxu0 0
  %846 = vmatprep.subr.bf16.mxu0 0
  %847 = vmatpush1.bf16.msra.mxu0 0
  %848 = vmatprep.mubr.bf16.mxu0 0
  %849 = vmatmul.mubr.bf16.gmra.mrb[0].mxu0 %v814
  %v850 = vpop.f32.mrb[0].mxu0
  %v851 = vadd.f32 %v808, %v850
  %v852 = vpop.f32.mrb[0].mxu0
  %v853 = vadd.f32 %v809, %v852
  %v854 = vpop.f32.mrb[0].mxu0
  %v855 = vpop.f32.mrb[0].mxu0
  %856 = vdwg.mxu0
  %v857 = vxor.u32 %v851, 2147483648
  %v858 = vxor.u32 %v853, 2147483648
  %v859 = vmul.f32 %v857, 1.442695
  %v860 = vpow.pop %v859
  %v861 = vmul.f32 %v858, 1.442695
  %v862 = vpow.pop %v861
  %v863 = vadd.f32 %v860, 1.0
  %v864 = vadd.f32 %v862, 1.0
  %v865 = vrcp.pop %v863
  %v866 = vmul.f32 1.0, %v865
  %v867 = vrcp.pop %v864
  %v868 = vmul.f32 1.0, %v867
  %v869 = vtanh.pop %v853
  %v870 = vmul.f32 %v866, %v801
  %v871 = vmul.f32 %v866, %v869
  %873 = vrot.lane.b32.xlu0 %v871, 64
  %v874 = vpop.permute.xlu0 %873
  %v876 = vadd.f32 %v870, %v874
  %v877 = vtanh.pop %v876
  %v878 = vmul.f32 %v868, %v877
  %v879 = vpack.c.bf16 %v878, %v878
  %v880 = vld [vmem:[%s4] sm:$0xf]
  %v881 = vld [vmem:[%s4 + $0x4] sm:$0xf]
  %v882 = vld [vmem:[%s4 + $0x8] sm:$0xf]
  %v883 = vld [vmem:[%s4 + $0xc] sm:$0xf]
  %v884 = vld [vmem:[%s5] sm:$0x1]
  %v886 = vlaneseq
  %v887 = vshrl.u32 %v886, 7
  %v888 = vsub.s32 0, %v887
  %v889 = vrot.slane %v884, %v888
  %892 = vrot.lane.b32.xlu0 %v879, 32
  %v893 = vpop.permute.xlu0 %892
  %v898 = vunpack.c.l.b16 %v880
  %v899 = vunpack.c.l.b16 %v881
  %v900 = vunpack.c.l.b16 %v882
  %v901 = vunpack.c.l.b16 %v883
  %v902 = vpack.c.b16 %v899, %v898
  %v903 = vpack.c.b16 %v901, %v900
  %vm906 = vcmask 261120
  %v908 = vsel %vm906, %v893, 0
  %910 = vmatprep.subr.bf16.mxu0 0
  %911 = vmatpush1.bf16.msra.mxu0 %v902
  %912 = vmatprep.subr.bf16.mxu0 0
  %913 = vmatpush1.bf16.msra.mxu0 %v903
  %914 = vmatprep.subr.bf16.mxu0 0
  %915 = vmatpush1.bf16.msra.mxu0 0
  %916 = vmatprep.subr.bf16.mxu0 0
  %917 = vmatpush1.bf16.msra.mxu0 0
  %918 = vmatprep.subr.bf16.mxu0 0
  %919 = vmatpush1.bf16.msra.mxu0 0
  %920 = vmatprep.subr.bf16.mxu0 0
  %921 = vmatpush1.bf16.msra.mxu0 0
  %922 = vmatprep.subr.bf16.mxu0 0
  %923 = vmatpush1.bf16.msra.mxu0 0
  %924 = vmatprep.subr.bf16.mxu0 0
  %925 = vmatpush1.bf16.msra.mxu0 0
  %926 = vmatprep.subr.bf16.mxu0 0
  %927 = vmatpush1.bf16.msra.mxu0 0
  %928 = vmatprep.subr.bf16.mxu0 0
  %929 = vmatpush1.bf16.msra.mxu0 0
  %930 = vmatprep.subr.bf16.mxu0 0
  %931 = vmatpush1.bf16.msra.mxu0 0
  %932 = vmatprep.subr.bf16.mxu0 0
  %933 = vmatpush1.bf16.msra.mxu0 0
  %934 = vmatprep.subr.bf16.mxu0 0
  %935 = vmatpush1.bf16.msra.mxu0 0
  %936 = vmatprep.subr.bf16.mxu0 0
  %937 = vmatpush1.bf16.msra.mxu0 0
  %938 = vmatprep.subr.bf16.mxu0 0
  %939 = vmatpush1.bf16.msra.mxu0 0
  %940 = vmatprep.subr.bf16.mxu0 0
  %941 = vmatpush1.bf16.msra.mxu0 0
  %942 = vmatprep.mubr.bf16.mxu0 0
  %943 = vmatmul.mubr.bf16.gmra.mrb[0].mxu0 %v908
  %v944 = vpop.f32.mrb[0].mxu0
  %v945 = vadd.f32 %v889, %v944
  %v946 = vpop.f32.mrb[0].mxu0
  %v947 = vpop.f32.mrb[0].mxu0
  %v948 = vpop.f32.mrb[0].mxu0
  %949 = vdwg.mxu0
  %950 = vst [vmem:[%s6] sm:$0xff] %v945
  // Predicated region
  $region26: #{lstm_classifier_pallas.1} parent=0 // pred_check
    _
  $region27: #{lstm_classifier_pallas.1} parent=0 // pred_check_branch
    %952 = sbr.rel (0) target = $region29
  $region28: #{lstm_classifier_pallas.1} parent=0 // pred_region
    _
  $region29: #{lstm_classifier_pallas.1} parent=0 // pred_fallthru
    _
  // Predicated region
  $region30: #{lstm_classifier_pallas.1} parent=0 // pred_check
    _
  $region31: #{lstm_classifier_pallas.1} parent=0 // pred_check_branch
    %954 = sbr.rel (0) target = $region33
  $region32: #{lstm_classifier_pallas.1} parent=0 // pred_region
    _
  $region33: #{lstm_classifier_pallas.1} parent=0 // pred_fallthru
    _

</llo_original>
